<compile_context>
chip_gen: v7x
topology: tpu7x:2x2x1
jax: 0.10.0
libtpu: 0.0.40
codegen_flags: <defaults>
</compile_context>

<pallas_src>
import jax
import jax.numpy as jnp
from jax.experimental import pallas as pl
from jax.experimental.pallas import tpu as pltpu


# ---------------------------------------------------------------------------
# Kernel
# ---------------------------------------------------------------------------
def _make_loss_kernel(vector_partials, w_blk):
    """Grid = (t, h_outer, h_inner, w_chunk).

    rv_ref / tgt_ref / logits_ref: (B, H_blk, W_blk) slabs (T and C squeezed
    away by the BlockSpecs).  l1_ref / bce_ref: (1, 1, 8, 128) output tiles,
    resident across the two arbitrary axes -> accumulated in place.
    """

    def kernel(rv_ref, tgt_ref, logits_ref, l1_ref, bce_ref):
        hi = pl.program_id(2)
        wi = pl.program_id(3)

        @pl.when((hi == 0) & (wi == 0))
        def _():
            l1_ref[...] = jnp.zeros_like(l1_ref)
            bce_ref[...] = jnp.zeros_like(bce_ref)

        rv = rv_ref[...].astype(jnp.float32)        # (B, Hb, Wb)
        tgt = tgt_ref[...].astype(jnp.float32)      # (B, Hb, Wb)
        x = logits_ref[...].astype(jnp.float32)     # (B, Hb, Wb)

        invalid = tgt == -1.0

        # ---- loss_range: gt_masked_output[target == -1] = -1 ; L1 ----
        masked = jnp.where(invalid, -1.0, rv)
        l1 = jnp.abs(masked - tgt)

        # ---- loss_mask: BCEWithLogits(x, y), y = (target != -1) ----
        # max(x,0) - x*y + log1p(exp(-|x|));  x*y folded into one select.
        xy = jnp.where(invalid, 0.0, x)
        bce = jnp.maximum(x, 0.0) - xy + jnp.log1p(jnp.exp(-jnp.abs(x)))

        if vector_partials:
            # Accumulate an (8,128) sublane/lane partial: pure VPU adds, no
            # cross-lane reduction and no scalar broadcast in the hot loop.
            def fold(v):
                p = jnp.sum(v.reshape(-1, 8, w_blk), axis=0)        # (8, Wb)
                if w_blk != 128:
                    p = jnp.sum(p.reshape(8, w_blk // 128, 128), axis=1)
                return p                                            # (8, 128)

            l1_ref[...] += fold(l1)[None, None]
            bce_ref[...] += fold(bce)[None, None]
        else:
            # Rare-shape fallback (B*Hb not a multiple of 8 / Wb not of 128):
            # broadcast-accumulate the scalar; every tile element holds the
            # same running total and the wrapper reads element [0,0].
            l1_ref[...] += jnp.sum(l1)
            bce_ref[...] += jnp.sum(bce)

    return kernel


# ---------------------------------------------------------------------------
# Tiling / VMEM planning
# ---------------------------------------------------------------------------
def _vmem_plan():
    """(total input-block budget across the 3 streams, vmem_limit_bytes)."""
    cap = 128 * 1024 * 1024
    try:
        cap = int(getattr(pltpu.get_tpu_info(), "vmem_capacity_bytes", cap))
    except Exception:
        pass
    if cap <= 64 * 1024 * 1024:
        # v7x-class: 64 MiB / TensorCore -> 2 buffers x 9 MiB = 18 MiB << 40.
        return 9 * 1024 * 1024, 40 * 1024 * 1024
    # v5e / v6e: 128 MiB -> bigger blocks amortize the ~0.35us/step overhead.
    return 24 * 1024 * 1024, 96 * 1024 * 1024


def _pick_tile(B, H, W, bytes_per_elem, block_budget):
    """Largest (h_blk, w_blk) with h_blk | H (mult of 8 or ==H), w_blk | W
    (mult of 128 or ==W) whose combined input-block bytes fit the budget.
    W is only split when even the 8-row slab does not fit."""
    h_cands = [hb for hb in range(H, 0, -1)
               if H % hb == 0 and (hb == H or hb % 8 == 0)]
    w_cands = [wb for wb in range(W, 0, -1)
               if W % wb == 0 and (wb == W or wb % 128 == 0)]
    for wb in w_cands:                       # prefer lane-dense full-W blocks
        for hb in h_cands:
            if B * hb * wb * bytes_per_elem <= block_budget:
                return hb, wb
    return h_cands[-1], w_cands[-1]          # smallest legal tile


# ---------------------------------------------------------------------------
# pallas_call wrapper: per-timestep partial sums
# ---------------------------------------------------------------------------
def _loss_partial_sums(rv, target, mask_logits):
    """Per-timestep (l1_sum[t], bce_sum[t]) in a single Pallas kernel.

    `target` is the full (B, T, C, H, W) tensor; channel 0 is selected by the
    BlockSpec (no JAX-side slice / HBM round-trip).
    """
    B, T, H, W = rv.shape
    bytes_per_elem = (jnp.dtype(rv.dtype).itemsize
                      + jnp.dtype(target.dtype).itemsize
                      + jnp.dtype(mask_logits.dtype).itemsize)
    block_budget, vmem_limit = _vmem_plan()
    h_blk, w_blk = _pick_tile(B, H, W, bytes_per_elem, block_budget)
    n_h = H // h_blk
    n_w = W // w_blk

    # Extra parallel axis so (T * n_ho) splits evenly across v7x's 2 cores.
    n_ho = 2 if (T % 2 == 1 and n_h % 2 == 0) else 1
    n_hi = n_h // n_ho

    vector_partials = ((B * h_blk) % 8 == 0) and (w_blk % 128 == 0)
    kernel = _make_loss_kernel(vector_partials, w_blk)

    rv_spec = pl.BlockSpec(
        (B, pl.Squeezed(), h_blk, w_blk),
        lambda t, ho, hi, wi: (0, t, ho * n_hi + hi, wi))
    tgt_spec = pl.BlockSpec(
        (B, pl.Squeezed(), pl.Squeezed(), h_blk, w_blk),
        lambda t, ho, hi, wi: (0, t, 0, ho * n_hi + hi, wi))
    out_spec = pl.BlockSpec((1, 1, 8, 128),
                            lambda t, ho, hi, wi: (t, ho, 0, 0))

    cost = pl.CostEstimate(
        flops=15 * B * T * H * W,
        transcendentals=2 * B * T * H * W,
        bytes_accessed=B * T * H * W * bytes_per_elem
        + 2 * T * n_ho * 8 * 128 * 4)

    l1, bce = pl.pallas_call(
        kernel,
        out_shape=(jax.ShapeDtypeStruct((T, n_ho, 8, 128), jnp.float32),
                   jax.ShapeDtypeStruct((T, n_ho, 8, 128), jnp.float32)),
        grid_spec=pltpu.PrefetchScalarGridSpec(
            num_scalar_prefetch=0,
            grid=(T, n_ho, n_hi, n_w),
            in_specs=[rv_spec, tgt_spec, rv_spec],
            out_specs=[out_spec, out_spec],
        ),
        compiler_params=pltpu.CompilerParams(
            dimension_semantics=("parallel", "parallel",
                                 "arbitrary", "arbitrary"),
            vmem_limit_bytes=vmem_limit),
        cost_estimate=cost,
    )(rv, target, mask_logits)

    if vector_partials:
        l1_t = jnp.sum(l1, axis=(1, 2, 3))
        bce_t = jnp.sum(bce, axis=(1, 2, 3))
    else:
        l1_t = jnp.sum(l1[:, :, 0, 0], axis=1)
        bce_t = jnp.sum(bce[:, :, 0, 0], axis=1)
    return l1_t, bce_t


# ---------------------------------------------------------------------------
# Loss.forward (train mode, epoch < 50, INS=False) equivalent
# ---------------------------------------------------------------------------
def loss_forward(output, target, cfg):
    rv = output["rv"]                       # (B, T, H, W)
    mask_logits = output["mask_logits"]     # (B, T, H, W)

    B, T, H, W = rv.shape
    n_per_t = B * H * W

    l1_sum_t, bce_sum_t = _loss_partial_sums(rv, target, mask_logits)

    loss_range_timestep = l1_sum_t / n_per_t                 # (T,)
    loss_range_view = jnp.sum(l1_sum_t) / (T * n_per_t)      # scalar mean
    loss_mask = jnp.sum(bce_sum_t) / (T * n_per_t)           # scalar mean

    # Disabled branches (reproduced exactly as the reference "else" paths):
    # TODO(synk): chamfer_distance (NN search + random subsampling) and
    # loss_instance_box (scipy Hungarian matching) have no clean Pallas
    # equivalent; they follow the disabled code path here.
    loss_chamfer_distance = jnp.zeros_like(loss_range_view)
    chamfer_distance = {s: jnp.zeros((1,), rv.dtype) for s in range(T)}
    chamfer_distances_tensor = jnp.zeros((T, 1), jnp.float32)
    loss_instance = jnp.float32(0.0)
    # TODO(synk): reference forward multiplies LOSS_WEIGHT_MOS by an undefined
    # local `loss_mos` (bug in the source); treated as 0 with weight 0 here.
    loss_mos = jnp.float32(0.0)

    w_cd = cfg["TRAIN"]["LOSS_WEIGHT_CHAMFER_DISTANCE"]
    w_rv = cfg["TRAIN"]["LOSS_WEIGHT_RANGE_VIEW"]
    w_mask = cfg["TRAIN"]["LOSS_WEIGHT_MASK"]
    w_mos = cfg["TRAIN"]["LOSS_WEIGHT_MOS"]

    loss = (w_cd * loss_chamfer_distance + w_rv * loss_range_view
            + w_mask * loss_mask + w_mos * loss_mos + loss_instance)

    return {
        "loss": loss,
        "chamfer_distance": chamfer_distance,
        "chamfer_distances_tensor": chamfer_distances_tensor,
        "mean_chamfer_distance": loss_chamfer_distance,
        "final_chamfer_distance": chamfer_distance[T - 1],
        "loss_range_view": loss_range_view,
        "loss_range_timestep": loss_range_timestep,
        "loss_mask": loss_mask,
        "loss_mos": loss_mos,
        "loss_instance": loss_instance,
    }


def _jax_reference(rv, target, mask_logits):
    """Plain-JAX reference of the two enabled loss terms (f32 math)."""
    tgt0 = target[:, :, 0, :, :].astype(jnp.float32)
    rv = rv.astype(jnp.float32)
    x = mask_logits.astype(jnp.float32)
    masked = jnp.where(tgt0 == -1.0, -1.0, rv)
    ref_rv_loss = jnp.mean(jnp.abs(masked - tgt0))
    y = jnp.where(tgt0 == -1.0, 0.0, 1.0)
    ref_bce = jnp.mean(jnp.maximum(x, 0.0) - x * y + jnp.log1p(jnp.exp(-jnp.abs(x))))
    return ref_rv_loss, ref_bce


if __name__ == "__main__":
    # Small shapes consistent with the module: B=2, T=5 future steps,
    # target has 5 channels (range, x, y, z, intensity), range image 16 x 128.
    B, T, C, H, W = 2, 5, 5, 16, 128

    cfg = {
        "MODEL": {"INS": False, "N_FUTURE_STEPS": T},
        "TRAIN": {
            "LOSS_WEIGHT_CHAMFER_DISTANCE": 0.0,
            "LOSS_WEIGHT_RANGE_VIEW": 1.0,
            "LOSS_WEIGHT_MASK": 1.0,
            "LOSS_WEIGHT_MOS": 0.0,
        },
        "TEST": {"N_DOWNSAMPLED_POINTS_CD": -1},
    }

    key = jax.random.PRNGKey(0)
    k_rv, k_logits, k_tgt, k_valid = jax.random.split(key, 4)

    rv = jax.random.uniform(k_rv, (B, T, H, W), jnp.float32, 0.0, 10.0)
    mask_logits = jax.random.normal(k_logits, (B, T, H, W), jnp.float32)

    target = jax.random.uniform(k_tgt, (B, T, C, H, W), jnp.float32, 0.0, 10.0)
    # mark ~30% of range pixels invalid (-1) in channel 0
    valid = jax.random.uniform(k_valid, (B, T, H, W)) > 0.3
    target = target.at[:, :, 0, :, :].set(
        jnp.where(valid, target[:, :, 0, :, :], -1.0))

    # ---- f32 run + tight correctness check ----
    loss_dict = loss_forward({"rv": rv, "mask_logits": mask_logits}, target, cfg)
    jax.block_until_ready(loss_dict["loss"])

    ref_rv_loss, ref_bce = _jax_reference(rv, target, mask_logits)
    assert jnp.allclose(loss_dict["loss_range_view"], ref_rv_loss, rtol=1e-5, atol=1e-5)
    assert jnp.allclose(loss_dict["loss_mask"], ref_bce, rtol=1e-5, atol=1e-5)
    assert jnp.allclose(loss_dict["loss"], ref_rv_loss + ref_bce, rtol=1e-5, atol=1e-5)
    assert jnp.allclose(loss_dict["loss_range_timestep"],
                        jnp.mean(jnp.abs(jnp.where(target[:, :, 0] == -1.0, -1.0, rv)
                                         - target[:, :, 0]), axis=(0, 2, 3)),
                        rtol=1e-5, atol=1e-5)

    # ---- bf16-streaming run: rv / mask_logits in bf16 (halved HBM traffic),
    #      target channel 0 kept in f32 so the exact -1.0 sentinel test is
    #      immune to bf16 rounding; all accumulation stays f32 in-kernel. ----
    rv_bf = rv.astype(jnp.bfloat16)
    logits_bf = mask_logits.astype(jnp.bfloat16)
    loss_dict_bf = loss_forward({"rv": rv_bf, "mask_logits": logits_bf}, target, cfg)
    jax.block_until_ready(loss_dict_bf["loss"])

    ref_rv_bf, ref_bce_bf = _jax_reference(rv_bf, target, logits_bf)
    assert jnp.allclose(loss_dict_bf["loss_range_view"], ref_rv_bf, rtol=1e-4, atol=1e-5)
    assert jnp.allclose(loss_dict_bf["loss_mask"], ref_bce_bf, rtol=1e-4, atol=1e-5)

    print("KERNEL_OK")
</pallas_src>

<mosaic_0001>
module attributes {stable_mosaic.version = 11 : i64} {
  func.func @kernel(%arg0: i32, %arg1: i32, %arg2: i32, %arg3: i32, %arg4: memref<2x1x16x128xf32, #tpu.memory_space<vmem>>, %arg5: memref<2x1x1x16x128xf32, #tpu.memory_space<vmem>>, %arg6: memref<2x1x16x128xf32, #tpu.memory_space<vmem>>, %arg7: memref<1x1x8x128xf32, #tpu.memory_space<vmem>>, %arg8: memref<1x1x8x128xf32, #tpu.memory_space<vmem>>) attributes {dimension_semantics = [#tpu.dimension_semantics<parallel>, #tpu.dimension_semantics<parallel>, #tpu.dimension_semantics<arbitrary>, #tpu.dimension_semantics<arbitrary>], iteration_bounds = array<i64: 5, 1, 1, 1>, scalar_prefetch = 0 : i64, scratch_operands = 0 : i64, tpu.core_type = #tpu.core_type<tc>, window_params = [{transform_indices = @transform_0, window_bounds = array<i64: 2, 1, 16, 128>}, {transform_indices = @transform_1, window_bounds = array<i64: 2, 1, 1, 16, 128>}, {transform_indices = @transform_2, window_bounds = array<i64: 2, 1, 16, 128>}, {transform_indices = @transform_3, window_bounds = array<i64: 1, 1, 8, 128>}, {transform_indices = @transform_4, window_bounds = array<i64: 1, 1, 8, 128>}]} {
    %c0_i32 = arith.constant 0 : i32
    %0 = arith.cmpi eq, %arg2, %c0_i32 : i32
    %c0_i32_0 = arith.constant 0 : i32
    %1 = arith.cmpi eq, %arg3, %c0_i32_0 : i32
    %2 = arith.andi %0, %1 : i1
    %3 = arith.extui %2 : i1 to i32
    %c0_i32_1 = arith.constant 0 : i32
    %4 = arith.cmpi ne, %3, %c0_i32_1 : i32
    scf.if %4 {
      %cst_36 = arith.constant 0.000000e+00 : f32
      %40 = vector.broadcast %cst_36 : f32 to vector<1x1x8x128xf32>
      %c0_37 = arith.constant 0 : index
      %c0_38 = arith.constant 0 : index
      %c0_39 = arith.constant 0 : index
      %c0_40 = arith.constant 0 : index
      %41 = vector.load %arg7[%c0_37, %c0_38, %c0_39, %c0_40] : memref<1x1x8x128xf32, #tpu.memory_space<vmem>>, vector<1x1x8x128xf32>
      tpu.vector_store %arg7[%c0_37, %c0_38, %c0_39, %c0_40], %40 {strides = array<i32>} : memref<1x1x8x128xf32, #tpu.memory_space<vmem>>, vector<1x1x8x128xf32>,
      %cst_41 = arith.constant 0.000000e+00 : f32
      %42 = vector.broadcast %cst_41 : f32 to vector<1x1x8x128xf32>
      %c0_42 = arith.constant 0 : index
      %c0_43 = arith.constant 0 : index
      %c0_44 = arith.constant 0 : index
      %c0_45 = arith.constant 0 : index
      %43 = vector.load %arg8[%c0_42, %c0_43, %c0_44, %c0_45] : memref<1x1x8x128xf32, #tpu.memory_space<vmem>>, vector<1x1x8x128xf32>
      tpu.vector_store %arg8[%c0_42, %c0_43, %c0_44, %c0_45], %42 {strides = array<i32>} : memref<1x1x8x128xf32, #tpu.memory_space<vmem>>, vector<1x1x8x128xf32>,
    } else {
    }
    %c0 = arith.constant 0 : index
    %c0_2 = arith.constant 0 : index
    %c0_3 = arith.constant 0 : index
    %c0_4 = arith.constant 0 : index
    %5 = vector.load %arg4[%c0, %c0_2, %c0_3, %c0_4] : memref<2x1x16x128xf32, #tpu.memory_space<vmem>>, vector<2x1x16x128xf32>
    %6 = vector.shape_cast %5 : vector<2x1x16x128xf32> to vector<2x16x128xf32>
    %c0_5 = arith.constant 0 : index
    %c0_6 = arith.constant 0 : index
    %c0_7 = arith.constant 0 : index
    %c0_8 = arith.constant 0 : index
    %c0_9 = arith.constant 0 : index
    %7 = vector.load %arg5[%c0_5, %c0_6, %c0_7, %c0_8, %c0_9] : memref<2x1x1x16x128xf32, #tpu.memory_space<vmem>>, vector<2x1x1x16x128xf32>
    %8 = vector.shape_cast %7 : vector<2x1x1x16x128xf32> to vector<2x16x128xf32>
    %c0_10 = arith.constant 0 : index
    %c0_11 = arith.constant 0 : index
    %c0_12 = arith.constant 0 : index
    %c0_13 = arith.constant 0 : index
    %9 = vector.load %arg6[%c0_10, %c0_11, %c0_12, %c0_13] : memref<2x1x16x128xf32, #tpu.memory_space<vmem>>, vector<2x1x16x128xf32>
    %10 = vector.shape_cast %9 : vector<2x1x16x128xf32> to vector<2x16x128xf32>
    %cst = arith.constant -1.000000e+00 : f32
    %11 = vector.broadcast %cst : f32 to vector<2x16x128xf32>
    %12 = arith.cmpf oeq, %8, %11 : vector<2x16x128xf32>
    %cst_14 = arith.constant -1.000000e+00 : f32
    %13 = vector.broadcast %cst_14 : f32 to vector<2x16x128xf32>
    %14 = arith.select %12, %13, %6 : vector<2x16x128xi1>, vector<2x16x128xf32>
    %15 = arith.subf %14, %8 : vector<2x16x128xf32>
    %16 = math.absf %15 : vector<2x16x128xf32>
    %cst_15 = arith.constant 0.000000e+00 : f32
    %17 = vector.broadcast %cst_15 : f32 to vector<2x16x128xf32>
    %18 = arith.select %12, %17, %10 : vector<2x16x128xi1>, vector<2x16x128xf32>
    %cst_16 = arith.constant 0.000000e+00 : f32
    %19 = vector.broadcast %cst_16 : f32 to vector<2x16x128xf32>
    %20 = arith.maximumf %10, %19 : vector<2x16x128xf32>
    %21 = arith.subf %20, %18 : vector<2x16x128xf32>
    %22 = math.absf %10 : vector<2x16x128xf32>
    %cst_17 = arith.constant 0.000000e+00 : f32
    %23 = vector.broadcast %cst_17 : f32 to vector<2x16x128xf32>
    %24 = arith.subf %23, %22 : vector<2x16x128xf32>
    %25 = math.exp %24 : vector<2x16x128xf32>
    %26 = math.log1p %25 : vector<2x16x128xf32>
    %27 = arith.addf %21, %26 : vector<2x16x128xf32>
    %c0_18 = arith.constant 0 : index
    %c0_19 = arith.constant 0 : index
    %c0_20 = arith.constant 0 : index
    %c0_21 = arith.constant 0 : index
    %28 = vector.load %arg7[%c0_18, %c0_19, %c0_20, %c0_21] : memref<1x1x8x128xf32, #tpu.memory_space<vmem>>, vector<1x1x8x128xf32>
    %29 = vector.shape_cast %16 : vector<2x16x128xf32> to vector<4x8x128xf32>
    %cst_22 = arith.constant dense<0.000000e+00> : vector<8x128xf32>
    %30 = vector.multi_reduction <add>, %29, %cst_22 [0] : vector<4x8x128xf32> to vector<8x128xf32>
    %31 = vector.shape_cast %30 : vector<8x128xf32> to vector<1x1x8x128xf32>
    %32 = arith.addf %28, %31 : vector<1x1x8x128xf32>
    %c0_23 = arith.constant 0 : index
    %c0_24 = arith.constant 0 : index
    %c0_25 = arith.constant 0 : index
    %c0_26 = arith.constant 0 : index
    %33 = vector.load %arg7[%c0_23, %c0_24, %c0_25, %c0_26] : memref<1x1x8x128xf32, #tpu.memory_space<vmem>>, vector<1x1x8x128xf32>
    tpu.vector_store %arg7[%c0_23, %c0_24, %c0_25, %c0_26], %32 {strides = array<i32>} : memref<1x1x8x128xf32, #tpu.memory_space<vmem>>, vector<1x1x8x128xf32>,
    %c0_27 = arith.constant 0 : index
    %c0_28 = arith.constant 0 : index
    %c0_29 = arith.constant 0 : index
    %c0_30 = arith.constant 0 : index
    %34 = vector.load %arg8[%c0_27, %c0_28, %c0_29, %c0_30] : memref<1x1x8x128xf32, #tpu.memory_space<vmem>>, vector<1x1x8x128xf32>
    %35 = vector.shape_cast %27 : vector<2x16x128xf32> to vector<4x8x128xf32>
    %cst_31 = arith.constant dense<0.000000e+00> : vector<8x128xf32>
    %36 = vector.multi_reduction <add>, %35, %cst_31 [0] : vector<4x8x128xf32> to vector<8x128xf32>
    %37 = vector.shape_cast %36 : vector<8x128xf32> to vector<1x1x8x128xf32>
    %38 = arith.addf %34, %37 : vector<1x1x8x128xf32>
    %c0_32 = arith.constant 0 : index
    %c0_33 = arith.constant 0 : index
    %c0_34 = arith.constant 0 : index
    %c0_35 = arith.constant 0 : index
    %39 = vector.load %arg8[%c0_32, %c0_33, %c0_34, %c0_35] : memref<1x1x8x128xf32, #tpu.memory_space<vmem>>, vector<1x1x8x128xf32>
    tpu.vector_store %arg8[%c0_32, %c0_33, %c0_34, %c0_35], %38 {strides = array<i32>} : memref<1x1x8x128xf32, #tpu.memory_space<vmem>>, vector<1x1x8x128xf32>,
    return
  }
  func.func @transform_0(%arg0: i32, %arg1: i32, %arg2: i32, %arg3: i32) -> (i32, i32, i32, i32) {
    %c1_i32 = arith.constant 1 : i32
    %0 = arith.muli %arg1, %c1_i32 : i32
    %1 = arith.addi %0, %arg2 : i32
    %c0_i32 = arith.constant 0 : i32
    %c0_i32_0 = arith.constant 0 : i32
    return %c0_i32, %arg0, %1, %arg3 : i32, i32, i32, i32
  }
  func.func @transform_1(%arg0: i32, %arg1: i32, %arg2: i32, %arg3: i32) -> (i32, i32, i32, i32, i32) {
    %c1_i32 = arith.constant 1 : i32
    %0 = arith.muli %arg1, %c1_i32 : i32
    %1 = arith.addi %0, %arg2 : i32
    %c0_i32 = arith.constant 0 : i32
    %c0_i32_0 = arith.constant 0 : i32
    %c0_i32_1 = arith.constant 0 : i32
    return %c0_i32, %arg0, %c0_i32_0, %1, %arg3 : i32, i32, i32, i32, i32
  }
  func.func @transform_2(%arg0: i32, %arg1: i32, %arg2: i32, %arg3: i32) -> (i32, i32, i32, i32) {
    %c1_i32 = arith.constant 1 : i32
    %0 = arith.muli %arg1, %c1_i32 : i32
    %1 = arith.addi %0, %arg2 : i32
    %c0_i32 = arith.constant 0 : i32
    %c0_i32_0 = arith.constant 0 : i32
    return %c0_i32, %arg0, %1, %arg3 : i32, i32, i32, i32
  }
  func.func @transform_3(%arg0: i32, %arg1: i32, %arg2: i32, %arg3: i32) -> (i32, i32, i32, i32) {
    %c0_i32 = arith.constant 0 : i32
    %c0_i32_0 = arith.constant 0 : i32
    %c0_i32_1 = arith.constant 0 : i32
    return %arg0, %arg1, %c0_i32, %c0_i32_0 : i32, i32, i32, i32
  }
  func.func @transform_4(%arg0: i32, %arg1: i32, %arg2: i32, %arg3: i32) -> (i32, i32, i32, i32) {
    %c0_i32 = arith.constant 0 : i32
    %c0_i32_0 = arith.constant 0 : i32
    %c0_i32_1 = arith.constant 0 : i32
    return %arg0, %arg1, %c0_i32, %c0_i32_0 : i32, i32, i32, i32
  }
}

</mosaic_0001>

<llo_original>
// kernel: tpu_custom_call.1
$region0: #{tpu_custom_call.1}
  #allocation0 [shape = 'u32[]', space=smem, size = 0x4, offset = 0x4, fixed_abs, tag = 'smem constant byte address 0x4 - core index']
  #allocation1 [shape = 'u32[144,128]{1,0:T(1,128)}', space=vmem, size = 0x12000, scoped, tag = 'internal scratch']
  #allocation11 [shape = 's32[]', space=sflag, size = 0x4, offset = 0, fixed_abs, tag = 'sflag constant byte address 0x0 - dummy sync flag']
  #allocation13 [shape = 's32[]', space=sflag, size = 0x4, offset = 0, fixed_abs, tag = 'sflag constant byte address 0x0 - dummy sync flag']
  #allocation15 [shape = 's32[]', space=sflag, size = 0x4, offset = 0, fixed_abs, tag = 'sflag constant byte address 0x0 - dummy sync flag']
  %s0 = inlined_call_operand.hbm [shape: f32[2,5,16,128], index: 0, kind: input, shape index: {}]
  %s1 = inlined_call_operand.hbm [shape: f32[2,5,5,16,128], index: 1, kind: input, shape index: {}]
  %s2 = inlined_call_operand.hbm [shape: f32[2,5,16,128], index: 2, kind: input, shape index: {}]
  %s3 = inlined_call_operand.hbm [shape: f32[5,1,8,128], index: 3, kind: output, shape index: {0}]
  %s4 = inlined_call_operand.hbm [shape: f32[5,1,8,128], index: 4, kind: output, shape index: {1}]
  %5 = xla_tuple %s3, %s4
  %s6 = sld [smem:[#allocation0]]
  $region69: #{tpu_custom_call.1} parent=0
    _
  %s8 = ssub.s32 1, %s6
  %s9 = scalar_select 0, %s8, %s6
  $region1: #{tpu_custom_call.1} parent=0
    #allocation2 [shape = 'u8[32768]{0}', space=vmem, size = 0x8000, scoped, tag = 'input window, operand 0']
    #allocation3 [shape = 's32[2]{0}', space=sflag, size = 0x8, scoped, tag = 'scoped memory for tpu_custom_call.1']
    #allocation4 [shape = 's32[2]{0}', space=sflag, size = 0x8, scoped, tag = 'scoped memory for tpu_custom_call.1']
    #allocation5 [shape = 'u8[32768]{0}', space=vmem, size = 0x8000, scoped, tag = 'input window, operand 1']
    #allocation6 [shape = 's32[2]{0}', space=sflag, size = 0x8, scoped, tag = 'scoped memory for tpu_custom_call.1']
    #allocation7 [shape = 'u8[32768]{0}', space=vmem, size = 0x8000, scoped, tag = 'input window, operand 2']
    #allocation8 [shape = 'u8[8192]{0}', space=vmem, size = 0x2000, scoped, tag = 'output window, operand 0']
    #allocation9 [shape = 'u8[8192]{0}', space=vmem, size = 0x2000, scoped, tag = 'output window, operand 1']
    #allocation10 [shape = 's32[2]{0}', space=sflag, size = 0x8, scoped, tag = 'scoped memory for tpu_custom_call.1']
    %10 = vsyncpa [#allocation3], 0
    %s11 = scalar_lea.sflag [#allocation3], 1
    %12 = vsyncpa %s11, 0
    %13 = vsyncpa [#allocation6], 0
    %s14 = scalar_lea.sflag [#allocation6], 1
    %15 = vsyncpa %s14, 0
    %16 = vsyncpa [#allocation4], 0
    %s17 = scalar_lea.sflag [#allocation4], 1
    %18 = vsyncpa %s17, 0
    %19 = vsyncpa [#allocation10], 0
    %s20 = scalar_lea.sflag [#allocation10], 1
    %21 = vsyncpa %s20, 0
    loop: start=0, step=1, limit=7
    $region2: #{tpu_custom_call.1} parent=1 // loop_pre_header
      _
    $region3: #{tpu_custom_call.1} parent=1 // loop_header
      %s23 = sphi 0, %s27
      %p24 = scmp.ge.s32.totalorder %s23, 7
      %s30 = sphi 0, %s56
      %s31 = sphi 0, %s52
      %s32 = sphi 0, %s48
      %s33 = sphi 0, %s44
      %s34 = sphi 0, %s30
      %s35 = sphi 0, %s31
      %s36 = sphi 0, %s32
      %s37 = sphi 0, %s33
      %s38 = sphi 0, %s34
      %s39 = sphi 0, %s35
      %s40 = sphi 0, %s36
      %s41 = sphi 0, %s37
      %s65 = sphi 0, %s67
      %s68 = sphi 0, %s65
      %s69 = sphi 0, %s68
      %s85 = sphi 0, %s69
      %s97 = sphi 0, %s99
      %s100 = sphi 0, %s97
      %s101 = sphi 0, %s100
      %s117 = sphi 0, %s101
      %s129 = sphi 0, %s131
      %s132 = sphi 0, %s129
      %s133 = sphi 0, %s132
      %s149 = sphi 0, %s133
      %s157 = sphi 0, %s159
      %s160 = sphi 0, %s157
      %s161 = sphi 0, %s160
      %s177 = sphi 0, %s161
      %s185 = sphi 0, %s187
      %s188 = sphi 0, %s185
      %s189 = sphi 0, %s188
      %s205 = sphi 0, %s189
    $region4: #{tpu_custom_call.1} parent=1 // loop_header_branch
      %26 = sbr.rel (%p24) target = $region8
    $region5: #{tpu_custom_call.1} parent=1 // loop_body
      %s28 = ssub.s32 %s23, 1
      %s29 = ssub.s32 %s23, 2
      %s42 = sadd.s32 1, %s33
      %p43 = scmp.ge.s32.totalorder %s42, 1
      %s44 = scalar_select %p43, 0, %s42
      %s45 = sadd.s32 1, %s32
      %s46 = scalar_select %p43, %s45, %s32
      %p47 = scmp.ge.s32.totalorder %s46, 1
      %s48 = scalar_select %p47, 0, %s46
      %s49 = sadd.s32 1, %s31
      %s50 = scalar_select %p47, %s49, %s31
      %p51 = scmp.ge.s32.totalorder %s50, 1
      %s52 = scalar_select %p51, 0, %s50
      %s53 = sadd.s32 1, %s30
      %s54 = scalar_select %p51, %s53, %s30
      %p55 = scmp.ge.s32.totalorder %s54, 5
      %s56 = scalar_select %p55, 0, %s54
      %s57 = sadd.s32 %s31, %s32
      %s58 = sadd.s32 %s52, %s48
      %s59 = ssub.s32 %s30, %s56
      %s60 = ssub.s32 %s57, %s58
      %s61 = sor.u32 %s59, %s60
      %s62 = ssub.s32 %s33, %s44
      %s63 = sor.u32 %s61, %s62
      %p64 = scmp.eq.s32.totalorder %s63, 0
      %s66 = sadd.s32 %s65, 1
      %s67 = scalar_select %p64, %s65, %s66
      %p70 = pneg %p64
      %p71 = scmp.eq.s32.totalorder %s23, 4
      %p72 = por %p70, %p71
      %p73 = scmp.ne.s32.totalorder %s65, %s68
      %p74 = scmp.eq.s32.totalorder %s23, 0
      %p75 = por %p73, %p74
      %p76 = scmp.ne.s32.totalorder %s65, %s68
      %p77 = scmp.eq.s32.totalorder %s28, 4
      %p78 = por %p76, %p77
      %p79 = scmp.ne.s32.totalorder %s68, %s69
      %p80 = scmp.eq.s32.totalorder %s28, 0
      %p81 = por %p79, %p80
      %p82 = scmp.ne.s32.totalorder %s68, %s69
      %p83 = scmp.eq.s32.totalorder %s29, 4
      %p84 = por %p82, %p83
      %p86 = scmp.ne.s32.totalorder %s69, %s85
      %p87 = scmp.eq.s32.totalorder %s29, 0
      %p88 = por %p86, %p87
      %s89 = sadd.s32 %s31, %s32
      %s90 = sadd.s32 %s52, %s48
      %s91 = ssub.s32 %s30, %s56
      %s92 = ssub.s32 %s89, %s90
      %s93 = sor.u32 %s91, %s92
      %s94 = ssub.s32 %s33, %s44
      %s95 = sor.u32 %s93, %s94
      %p96 = scmp.eq.s32.totalorder %s95, 0
      %s98 = sadd.s32 %s97, 1
      %s99 = scalar_select %p96, %s97, %s98
      %p102 = pneg %p96
      %p103 = scmp.eq.s32.totalorder %s23, 4
      %p104 = por %p102, %p103
      %p105 = scmp.ne.s32.totalorder %s97, %s100
      %p106 = scmp.eq.s32.totalorder %s23, 0
      %p107 = por %p105, %p106
      %p108 = scmp.ne.s32.totalorder %s97, %s100
      %p109 = scmp.eq.s32.totalorder %s28, 4
      %p110 = por %p108, %p109
      %p111 = scmp.ne.s32.totalorder %s100, %s101
      %p112 = scmp.eq.s32.totalorder %s28, 0
      %p113 = por %p111, %p112
      %p114 = scmp.ne.s32.totalorder %s100, %s101
      %p115 = scmp.eq.s32.totalorder %s29, 4
      %p116 = por %p114, %p115
      %p118 = scmp.ne.s32.totalorder %s101, %s117
      %p119 = scmp.eq.s32.totalorder %s29, 0
      %p120 = por %p118, %p119
      %s121 = sadd.s32 %s31, %s32
      %s122 = sadd.s32 %s52, %s48
      %s123 = ssub.s32 %s30, %s56
      %s124 = ssub.s32 %s121, %s122
      %s125 = sor.u32 %s123, %s124
      %s126 = ssub.s32 %s33, %s44
      %s127 = sor.u32 %s125, %s126
      %p128 = scmp.eq.s32.totalorder %s127, 0
      %s130 = sadd.s32 %s129, 1
      %s131 = scalar_select %p128, %s129, %s130
      %p134 = pneg %p128
      %p135 = scmp.eq.s32.totalorder %s23, 4
      %p136 = por %p134, %p135
      %p137 = scmp.ne.s32.totalorder %s129, %s132
      %p138 = scmp.eq.s32.totalorder %s23, 0
      %p139 = por %p137, %p138
      %p140 = scmp.ne.s32.totalorder %s129, %s132
      %p141 = scmp.eq.s32.totalorder %s28, 4
      %p142 = por %p140, %p141
      %p143 = scmp.ne.s32.totalorder %s132, %s133
      %p144 = scmp.eq.s32.totalorder %s28, 0
      %p145 = por %p143, %p144
      %p146 = scmp.ne.s32.totalorder %s132, %s133
      %p147 = scmp.eq.s32.totalorder %s29, 4
      %p148 = por %p146, %p147
      %p150 = scmp.ne.s32.totalorder %s133, %s149
      %p151 = scmp.eq.s32.totalorder %s29, 0
      %p152 = por %p150, %p151
      %s153 = ssub.s32 %s30, %s56
      %s154 = ssub.s32 %s31, %s52
      %s155 = sor.u32 %s153, %s154
      %p156 = scmp.eq.s32.totalorder %s155, 0
      %s158 = sadd.s32 %s157, 1
      %s159 = scalar_select %p156, %s157, %s158
      %p162 = pneg %p156
      %p163 = scmp.eq.s32.totalorder %s23, 4
      %p164 = por %p162, %p163
      %p165 = scmp.ne.s32.totalorder %s157, %s160
      %p166 = scmp.eq.s32.totalorder %s23, 0
      %p167 = por %p165, %p166
      %p168 = scmp.ne.s32.totalorder %s157, %s160
      %p169 = scmp.eq.s32.totalorder %s28, 4
      %p170 = por %p168, %p169
      %p171 = scmp.ne.s32.totalorder %s160, %s161
      %p172 = scmp.eq.s32.totalorder %s28, 0
      %p173 = por %p171, %p172
      %p174 = scmp.ne.s32.totalorder %s160, %s161
      %p175 = scmp.eq.s32.totalorder %s29, 4
      %p176 = por %p174, %p175
      %p178 = scmp.ne.s32.totalorder %s161, %s177
      %p179 = scmp.eq.s32.totalorder %s29, 0
      %p180 = por %p178, %p179
      %s181 = ssub.s32 %s30, %s56
      %s182 = ssub.s32 %s31, %s52
      %s183 = sor.u32 %s181, %s182
      %p184 = scmp.eq.s32.totalorder %s183, 0
      %s186 = sadd.s32 %s185, 1
      %s187 = scalar_select %p184, %s185, %s186
      %p190 = pneg %p184
      %p191 = scmp.eq.s32.totalorder %s23, 4
      %p192 = por %p190, %p191
      %p193 = scmp.ne.s32.totalorder %s185, %s188
      %p194 = scmp.eq.s32.totalorder %s23, 0
      %p195 = por %p193, %p194
      %p196 = scmp.ne.s32.totalorder %s185, %s188
      %p197 = scmp.eq.s32.totalorder %s28, 4
      %p198 = por %p196, %p197
      %p199 = scmp.ne.s32.totalorder %s188, %s189
      %p200 = scmp.eq.s32.totalorder %s28, 0
      %p201 = por %p199, %p200
      %p202 = scmp.ne.s32.totalorder %s188, %s189
      %p203 = scmp.eq.s32.totalorder %s29, 4
      %p204 = por %p202, %p203
      %p206 = scmp.ne.s32.totalorder %s189, %s205
      %p207 = scmp.eq.s32.totalorder %s29, 0
      %p208 = por %p206, %p207
      %p209 = scmp.le.s32.totalorder 1, %s23
      %p210 = scmp.lt.s32.totalorder %s23, 6
      %p211 = pnand %p209, %p210
      %p212 = pneg %p211
      // Predicated region
      $region9: #{tpu_custom_call.1} parent=5 // pred_check
        _
      $region10: #{tpu_custom_call.1} parent=5 // pred_check_branch
        %214 = sbr.rel (%p211) target = $region12
      $region11: #{tpu_custom_call.1} parent=5 // pred_region
        %s215 = ssub.s32 %s23, 1
      $region12: #{tpu_custom_call.1} parent=5 // pred_fallthru
        _
      %p216 = scmp.lt.s32.totalorder %s23, 5
      // Predicated region
      $region13: #{tpu_custom_call.1} parent=5 // pred_check
        %p217 = pneg %p216
      $region14: #{tpu_custom_call.1} parent=5 // pred_check_branch
        %219 = sbr.rel (%p217) target = $region16
      $region15: #{tpu_custom_call.1} parent=5 // pred_region
        // Predicated region
        $region17: #{tpu_custom_call.1} parent=15 // pred_check
          %p220 = pneg %p75
        $region18: #{tpu_custom_call.1} parent=15 // pred_check_branch
          %222 = sbr.rel (%p220) target = $region20
        $region19: #{tpu_custom_call.1} parent=15 // pred_region
          #allocation12 [shape = 'u32[6]{0}', space=smem, size = 0x18, scoped, tag = 'DMA stride descriptor']
          %s223 = sand.u32 %s65, 1
          %s224 = scalar_lea.sflag [#allocation3], %s223
          %s225 = sand.u32 %s65, 1
          %s226 = smul.addr %s225, 32
          %s227 = scalar_lea.vmem [#allocation2], %s226
          %s228 = sadd.s32 %s31, %s32
          %s229 = smul.u32 2, %s228
          %s231 = ssub.s32 512, 512
          %232 = vsyncadd %s224, %s231
          %s233 = sadd.s32 %s33, %s229
          %s234 = smul.addr %s30, 2
          %s235 = sadd.s32 %s233, %s234
          %s236 = smul.addr %s235, 128
          %s237 = scalar_lea.hbm %s0, %s236
          %s239 = sshll.u32 1, 14
          %s240 = sxor.u32 4294967295, %s239
          %s242 = sld [smem:[#allocation0]]
          %s243 = sadd.s32 2, %s242
          %s245 = sshll.u32 7, 26
          %s246 = sxor.u32 4294967295, %s245
          %s247 = sand.u32 0, %s246
          %s248 = sshll.u32 %s243, 26
          %s249 = sor.u32 %s247, %s248
          %s250 = sshll.u32 %s227, 4
          %s251 = int_to_ptr.vmem [resolvable:$true] %s250
          %257 = sst [smem:[#allocation12]] 1280
          %s258 = scalar_lea.smem [#allocation12], 1
          %259 = sst [smem:[%s258]] 256
          %s260 = scalar_lea.smem [#allocation12], 2
          %261 = sst [smem:[%s260]] 2
          %s262 = scalar_lea.smem [#allocation12], 3
          %263 = sst [smem:[%s262]] 128
          %s264 = scalar_lea.smem [#allocation12], 4
          %265 = sst [smem:[%s264]] 128
          %s266 = scalar_lea.smem [#allocation12], 5
          %267 = sst [smem:[%s266]] 8
          %269 = dma.general %s237, 512, %s251, %s224, [#allocation11], [#allocation12], %s249, 0
        $region20: #{tpu_custom_call.1} parent=15 // pred_fallthru
          _
        // Predicated region
        $region21: #{tpu_custom_call.1} parent=15 // pred_check
          %p270 = pneg %p107
        $region22: #{tpu_custom_call.1} parent=15 // pred_check_branch
          %272 = sbr.rel (%p270) target = $region24
        $region23: #{tpu_custom_call.1} parent=15 // pred_region
          #allocation14 [shape = 'u32[6]{0}', space=smem, size = 0x18, scoped, tag = 'DMA stride descriptor']
          %s273 = sand.u32 %s23, 1
          %s274 = scalar_lea.sflag [#allocation6], %s273
          %s275 = sand.u32 %s97, 1
          %s276 = smul.addr %s275, 32
          %s277 = scalar_lea.vmem [#allocation5], %s276
          %s278 = sadd.s32 %s31, %s32
          %s279 = smul.u32 2, %s278
          %s281 = ssub.s32 512, 512
          %282 = vsyncadd %s274, %s281
          %s283 = sadd.s32 %s33, %s279
          %s284 = smul.addr %s30, 10
          %s285 = sadd.s32 %s283, %s284
          %s286 = smul.addr %s285, 128
          %s287 = scalar_lea.hbm %s1, %s286
          %s289 = sshll.u32 1, 14
          %s290 = sxor.u32 4294967295, %s289
          %s292 = sld [smem:[#allocation0]]
          %s293 = sadd.s32 2, %s292
          %s295 = sshll.u32 7, 26
          %s296 = sxor.u32 4294967295, %s295
          %s297 = sand.u32 0, %s296
          %s298 = sshll.u32 %s293, 26
          %s299 = sor.u32 %s297, %s298
          %s300 = sshll.u32 %s277, 4
          %s301 = int_to_ptr.vmem [resolvable:$true] %s300
          %307 = sst [smem:[#allocation14]] 6400
          %s308 = scalar_lea.smem [#allocation14], 1
          %309 = sst [smem:[%s308]] 256
          %s310 = scalar_lea.smem [#allocation14], 2
          %311 = sst [smem:[%s310]] 2
          %s312 = scalar_lea.smem [#allocation14], 3
          %313 = sst [smem:[%s312]] 128
          %s314 = scalar_lea.smem [#allocation14], 4
          %315 = sst [smem:[%s314]] 128
          %s316 = scalar_lea.smem [#allocation14], 5
          %317 = sst [smem:[%s316]] 8
          %319 = dma.general %s287, 512, %s301, %s274, [#allocation13], [#allocation14], %s299, 0
        $region24: #{tpu_custom_call.1} parent=15 // pred_fallthru
          _
        // Predicated region
        $region25: #{tpu_custom_call.1} parent=15 // pred_check
          %p320 = pneg %p139
        $region26: #{tpu_custom_call.1} parent=15 // pred_check_branch
          %322 = sbr.rel (%p320) target = $region28
        $region27: #{tpu_custom_call.1} parent=15 // pred_region
          #allocation16 [shape = 'u32[6]{0}', space=smem, size = 0x18, scoped, tag = 'DMA stride descriptor']
          %s323 = sand.u32 %s23, 1
          %s324 = scalar_lea.sflag [#allocation6], %s323
          %s325 = sand.u32 %s129, 1
          %s326 = smul.addr %s325, 32
          %s327 = scalar_lea.vmem [#allocation7], %s326
          %s328 = sadd.s32 %s31, %s32
          %s329 = smul.u32 2, %s328
          %s331 = ssub.s32 512, 512
          %332 = vsyncadd %s324, %s331
          %s333 = sadd.s32 %s33, %s329
          %s334 = smul.addr %s30, 2
          %s335 = sadd.s32 %s333, %s334
          %s336 = smul.addr %s335, 128
          %s337 = scalar_lea.hbm %s2, %s336
          %s339 = sshll.u32 1, 14
          %s340 = sxor.u32 4294967295, %s339
          %s342 = sld [smem:[#allocation0]]
          %s343 = sadd.s32 2, %s342
          %s345 = sshll.u32 7, 26
          %s346 = sxor.u32 4294967295, %s345
          %s347 = sand.u32 0, %s346
          %s348 = sshll.u32 %s343, 26
          %s349 = sor.u32 %s347, %s348
          %s350 = sshll.u32 %s327, 4
          %s351 = int_to_ptr.vmem [resolvable:$true] %s350
          %357 = sst [smem:[#allocation16]] 1280
          %s358 = scalar_lea.smem [#allocation16], 1
          %359 = sst [smem:[%s358]] 256
          %s360 = scalar_lea.smem [#allocation16], 2
          %361 = sst [smem:[%s360]] 2
          %s362 = scalar_lea.smem [#allocation16], 3
          %363 = sst [smem:[%s362]] 128
          %s364 = scalar_lea.smem [#allocation16], 4
          %365 = sst [smem:[%s364]] 128
          %s366 = scalar_lea.smem [#allocation16], 5
          %367 = sst [smem:[%s366]] 8
          %369 = dma.general %s337, 512, %s351, %s324, [#allocation15], [#allocation16], %s349, 0
        $region28: #{tpu_custom_call.1} parent=15 // pred_fallthru
          _
      $region16: #{tpu_custom_call.1} parent=5 // pred_fallthru
        _
      %p370 = scmp.le.s32.totalorder 1, %s23
      %p371 = scmp.lt.s32.totalorder %s23, 6
      %p372 = pnand %p370, %p371
      %p373 = pneg %p372
      // Predicated region
      $region29: #{tpu_custom_call.1} parent=5 // pred_check
        _
      $region30: #{tpu_custom_call.1} parent=5 // pred_check_branch
        %375 = sbr.rel (%p372) target = $region32
      $region31: #{tpu_custom_call.1} parent=5 // pred_region
        %s376 = ssub.s32 %s23, 1
        %s377 = sand.u32 %s68, 1
        %s378 = scalar_lea.sflag [#allocation3], %s377
        %s379 = sand.u32 %s68, 1
        %s380 = smul.addr %s379, 32
        %s381 = scalar_lea.vmem [#allocation2], %s380
        // Predicated region
        $region33: #{tpu_custom_call.1} parent=31 // pred_check
          %p382 = pneg %p81
        $region34: #{tpu_custom_call.1} parent=31 // pred_check_branch
          %384 = sbr.rel (%p382) target = $region36
        $region35: #{tpu_custom_call.1} parent=31 // pred_region
          %385 = dma.done %s378, 512
        $region36: #{tpu_custom_call.1} parent=31 // pred_fallthru
          _
        %s386 = sand.u32 %s28, 1
        %s387 = scalar_lea.sflag [#allocation6], %s386
        %s388 = sand.u32 %s100, 1
        %s389 = smul.addr %s388, 32
        %s390 = scalar_lea.vmem [#allocation5], %s389
        // Predicated region
        $region37: #{tpu_custom_call.1} parent=31 // pred_check
          %p391 = pneg %p113
        $region38: #{tpu_custom_call.1} parent=31 // pred_check_branch
          %393 = sbr.rel (%p391) target = $region40
        $region39: #{tpu_custom_call.1} parent=31 // pred_region
          %394 = dma.done %s387, 512
        $region40: #{tpu_custom_call.1} parent=31 // pred_fallthru
          _
        %s395 = sand.u32 %s28, 1
        %s396 = scalar_lea.sflag [#allocation6], %s395
        %s397 = sand.u32 %s132, 1
        %s398 = smul.addr %s397, 32
        %s399 = scalar_lea.vmem [#allocation7], %s398
        // Predicated region
        $region41: #{tpu_custom_call.1} parent=31 // pred_check
          %p400 = pneg %p145
        $region42: #{tpu_custom_call.1} parent=31 // pred_check_branch
          %402 = sbr.rel (%p400) target = $region44
        $region43: #{tpu_custom_call.1} parent=31 // pred_region
          %403 = dma.done %s396, 512
        $region44: #{tpu_custom_call.1} parent=31 // pred_fallthru
          _
        %s404 = sand.u32 %s68, 1
        %s405 = scalar_lea.sflag [#allocation3], %s404
        %s406 = sand.u32 %s68, 1
        %s407 = smul.addr %s406, 32
        %s408 = scalar_lea.vmem [#allocation2], %s407
        %p409 = pneg %p81
        %p410 = pneg %p78
        %s411 = sand.u32 %s28, 1
        %s412 = scalar_lea.sflag [#allocation6], %s411
        %s413 = sand.u32 %s100, 1
        %s414 = smul.addr %s413, 32
        %s415 = scalar_lea.vmem [#allocation5], %s414
        %p416 = pneg %p113
        %p417 = pneg %p110
        %s418 = sand.u32 %s28, 1
        %s419 = scalar_lea.sflag [#allocation6], %s418
        %s420 = sand.u32 %s132, 1
        %s421 = smul.addr %s420, 32
        %s422 = scalar_lea.vmem [#allocation7], %s421
        %p423 = pneg %p145
        %p424 = pneg %p142
        %p425 = pneg %p173
        %p426 = pneg %p170
        %s427 = sand.u32 %s160, 1
        %s428 = scalar_lea.sflag [#allocation4], %s427
        %s429 = sand.u32 %s160, 1
        %s430 = smul.addr %s429, 8
        %s431 = scalar_lea.vmem [#allocation8], %s430
        %p432 = pneg %p201
        %p433 = pneg %p198
        %s434 = sand.u32 %s188, 1
        %s435 = scalar_lea.sflag [#allocation10], %s434
        %s436 = sand.u32 %s188, 1
        %s437 = smul.addr %s436, 8
        %s438 = scalar_lea.vmem [#allocation9], %s437
        %s439 = sadd.s32 %s35, %s36
        %s440 = smul.u32 2, %s439
        %s441 = sadd.s32 %s35, %s36
        %s442 = smul.u32 2, %s441
        %s443 = sadd.s32 %s35, %s36
        %s444 = smul.u32 2, %s443
        %p445 = scmp.eq.s32.totalorder %s36, 0
        %p446 = scmp.eq.s32.totalorder %s37, 0
        %p447 = pnand %p445, %p446
        %p448 = pneg %p447
        // Predicated region
        $region45: #{tpu_custom_call.1} parent=31 // pred_check
          _
        $region46: #{tpu_custom_call.1} parent=31 // pred_check_branch
          %450 = sbr.rel (%p447) target = $region48
        $region47: #{tpu_custom_call.1} parent=31 // pred_region
          %451 = vst [vmem:[%s431] sm:$0xff] 0.0
          %452 = vst [vmem:[%s438] sm:$0xff] 0.0
        $region48: #{tpu_custom_call.1} parent=31 // pred_fallthru
          _
        %v453 = vld [vmem:[%s381] sm:$0xff]
        %v454 = vld [vmem:[%s381 + $0x8] sm:$0xff]
        %v455 = vld [vmem:[%s381 + $0x10] sm:$0xff]
        %v456 = vld [vmem:[%s381 + $0x18] sm:$0xff]
        %v457 = vld [vmem:[%s390] sm:$0xff]
        %v458 = vld [vmem:[%s390 + $0x8] sm:$0xff]
        %v459 = vld [vmem:[%s390 + $0x10] sm:$0xff]
        %v460 = vld [vmem:[%s390 + $0x18] sm:$0xff]
        %v461 = vld [vmem:[%s399] sm:$0xff]
        %v462 = vld [vmem:[%s399 + $0x8] sm:$0xff]
        %v463 = vld [vmem:[%s399 + $0x10] sm:$0xff]
        %v464 = vld [vmem:[%s399 + $0x18] sm:$0xff]
        %vm465 = vcmp.eq.f32.partialorder %v457, -1.0
        %vm466 = vcmp.eq.f32.partialorder %v458, -1.0
        %vm467 = vcmp.eq.f32.partialorder %v459, -1.0
        %vm468 = vcmp.eq.f32.partialorder %v460, -1.0
        %v469 = vsel %vm465, -1.0, %v453
        %v470 = vsel %vm466, -1.0, %v454
        %v471 = vsel %vm467, -1.0, %v455
        %v472 = vsel %vm468, -1.0, %v456
        %v473 = vsub.f32 %v469, %v457
        %v474 = vsub.f32 %v470, %v458
        %v475 = vsub.f32 %v471, %v459
        %v476 = vsub.f32 %v472, %v460
        %v477 = vand.u32 2147483647, %v473
        %v478 = vand.u32 2147483647, %v474
        %v479 = vand.u32 2147483647, %v475
        %v480 = vand.u32 2147483647, %v476
        %v481 = vsel %vm465, 0.0, %v461
        %v482 = vsel %vm466, 0.0, %v462
        %v483 = vsel %vm467, 0.0, %v463
        %v484 = vsel %vm468, 0.0, %v464
        %v485 = vmax.f32 %v461, 0.0
        %v486 = vmax.f32 %v462, 0.0
        %v487 = vmax.f32 %v463, 0.0
        %v488 = vmax.f32 %v464, 0.0
        %v489 = vsub.f32 %v485, %v481
        %v490 = vsub.f32 %v486, %v482
        %v491 = vsub.f32 %v487, %v483
        %v492 = vsub.f32 %v488, %v484
        %v493 = vand.u32 2147483647, %v461
        %v494 = vand.u32 2147483647, %v462
        %v495 = vand.u32 2147483647, %v463
        %v496 = vand.u32 2147483647, %v464
        %v497 = vsub.f32 0.0, %v493
        %v498 = vsub.f32 0.0, %v494
        %v499 = vsub.f32 0.0, %v495
        %v500 = vsub.f32 0.0, %v496
        %v501 = vmul.f32 %v497, 1.442695
        %v502 = vpow.pop %v501
        %v503 = vmul.f32 %v498, 1.442695
        %v504 = vpow.pop %v503
        %v505 = vmul.f32 %v499, 1.442695
        %v506 = vpow.pop %v505
        %v507 = vmul.f32 %v500, 1.442695
        %v508 = vpow.pop %v507
        %v509 = vadd.f32 %v502, 1.0
        %v510 = vlog2.pop %v509
        %v511 = vmul.f32 %v510, 0.6931472
        %v512 = vmul.f32 -0.5, %v502
        %v513 = vadd.f32 %v512, 1.0
        %v514 = vmul.f32 %v513, %v502
        %v515 = vand.u32 2147483647, %v502
        %vm516 = vcmp.lt.f32.partialorder %v515, 0.0004427343
        %v517 = vsel %vm516, %v514, %v511
        %v518 = vadd.f32 %v504, 1.0
        %v519 = vlog2.pop %v518
        %v520 = vmul.f32 %v519, 0.6931472
        %v521 = vmul.f32 -0.5, %v504
        %v522 = vadd.f32 %v521, 1.0
        %v523 = vmul.f32 %v522, %v504
        %v524 = vand.u32 2147483647, %v504
        %vm525 = vcmp.lt.f32.partialorder %v524, 0.0004427343
        %v526 = vsel %vm525, %v523, %v520
        %v527 = vadd.f32 %v506, 1.0
        %v528 = vlog2.pop %v527
        %v529 = vmul.f32 %v528, 0.6931472
        %v530 = vmul.f32 -0.5, %v506
        %v531 = vadd.f32 %v530, 1.0
        %v532 = vmul.f32 %v531, %v506
        %v533 = vand.u32 2147483647, %v506
        %vm534 = vcmp.lt.f32.partialorder %v533, 0.0004427343
        %v535 = vsel %vm534, %v532, %v529
        %v536 = vadd.f32 %v508, 1.0
        %v537 = vlog2.pop %v536
        %v538 = vmul.f32 %v537, 0.6931472
        %v539 = vmul.f32 -0.5, %v508
        %v540 = vadd.f32 %v539, 1.0
        %v541 = vmul.f32 %v540, %v508
        %v542 = vand.u32 2147483647, %v508
        %vm543 = vcmp.lt.f32.partialorder %v542, 0.0004427343
        %v544 = vsel %vm543, %v541, %v538
        %v545 = vadd.f32 %v489, %v517
        %v546 = vadd.f32 %v490, %v526
        %v547 = vadd.f32 %v491, %v535
        %v548 = vadd.f32 %v492, %v544
        %v549 = vld [vmem:[%s431] sm:$0xff]
        %v550 = vadd.f32 %v477, %v478
        %v551 = vadd.f32 %v550, %v479
        %v552 = vadd.f32 %v551, %v480
        %v553 = vadd.f32 %v549, %v552
        %554 = vst [vmem:[%s431] sm:$0xff] %v553
        %v555 = vld [vmem:[%s438] sm:$0xff]
        %v556 = vadd.f32 %v545, %v546
        %v557 = vadd.f32 %v556, %v547
        %v558 = vadd.f32 %v557, %v548
        %v559 = vadd.f32 %v555, %v558
        %560 = vst [vmem:[%s438] sm:$0xff] %v559
        %s561 = sand.u32 %s160, 1
        %s562 = scalar_lea.sflag [#allocation4], %s561
        %s563 = sand.u32 %s160, 1
        %s564 = smul.addr %s563, 8
        %s565 = scalar_lea.vmem [#allocation8], %s564
        %s566 = sand.u32 %s188, 1
        %s567 = scalar_lea.sflag [#allocation10], %s566
        %s568 = sand.u32 %s188, 1
        %s569 = smul.addr %s568, 8
        %s570 = scalar_lea.vmem [#allocation9], %s569
        // Predicated region
        $region49: #{tpu_custom_call.1} parent=31 // pred_check
          %p571 = pneg %p170
        $region50: #{tpu_custom_call.1} parent=31 // pred_check_branch
          %573 = sbr.rel (%p571) target = $region52
        $region51: #{tpu_custom_call.1} parent=31 // pred_region
          %s575 = ssub.s32 128, 128
          %576 = vsyncadd %s562, %s575
          %s577 = sadd.s32 %s35, %s34
          %s578 = smul.addr %s577, 128
          %s579 = scalar_lea.hbm %s3, %s578
          %s581 = sshll.u32 %s565, 4
          %s582 = int_to_ptr.vmem [resolvable:$true] %s581
          %584 = dma.vmem_to_hbm [thread:$0]  %s582, 128, %s579, %s562
        $region52: #{tpu_custom_call.1} parent=31 // pred_fallthru
          _
        // Predicated region
        $region53: #{tpu_custom_call.1} parent=31 // pred_check
          %p585 = pneg %p198
        $region54: #{tpu_custom_call.1} parent=31 // pred_check_branch
          %587 = sbr.rel (%p585) target = $region56
        $region55: #{tpu_custom_call.1} parent=31 // pred_region
          %s589 = ssub.s32 128, 128
          %590 = vsyncadd %s567, %s589
          %s591 = sadd.s32 %s35, %s34
          %s592 = smul.addr %s591, 128
          %s593 = scalar_lea.hbm %s4, %s592
          %s595 = sshll.u32 %s570, 4
          %s596 = int_to_ptr.vmem [resolvable:$true] %s595
          %598 = dma.vmem_to_hbm [thread:$0]  %s596, 128, %s593, %s567
        $region56: #{tpu_custom_call.1} parent=31 // pred_fallthru
          _
      $region32: #{tpu_custom_call.1} parent=5 // pred_fallthru
        _
      %p599 = scmp.le.s32.totalorder 2, %s23
      // Predicated region
      $region57: #{tpu_custom_call.1} parent=5 // pred_check
        %p600 = pneg %p599
      $region58: #{tpu_custom_call.1} parent=5 // pred_check_branch
        %602 = sbr.rel (%p600) target = $region60
      $region59: #{tpu_custom_call.1} parent=5 // pred_region
        %s603 = ssub.s32 %s23, 2
        // Predicated region
        $region61: #{tpu_custom_call.1} parent=59 // pred_check
          %p604 = pneg %p176
        $region62: #{tpu_custom_call.1} parent=59 // pred_check_branch
          %606 = sbr.rel (%p604) target = $region64
        $region63: #{tpu_custom_call.1} parent=59 // pred_region
          %s607 = sand.u32 %s161, 1
          %s608 = scalar_lea.sflag [#allocation4], %s607
          %s609 = sand.u32 %s161, 1
          %s610 = smul.addr %s609, 8
          %s611 = scalar_lea.vmem [#allocation8], %s610
          %612 = dma.done %s608, 128
        $region64: #{tpu_custom_call.1} parent=59 // pred_fallthru
          _
        // Predicated region
        $region65: #{tpu_custom_call.1} parent=59 // pred_check
          %p613 = pneg %p204
        $region66: #{tpu_custom_call.1} parent=59 // pred_check_branch
          %615 = sbr.rel (%p613) target = $region68
        $region67: #{tpu_custom_call.1} parent=59 // pred_region
          %s616 = sand.u32 %s189, 1
          %s617 = scalar_lea.sflag [#allocation10], %s616
          %s618 = sand.u32 %s189, 1
          %s619 = smul.addr %s618, 8
          %s620 = scalar_lea.vmem [#allocation9], %s619
          %621 = dma.done %s617, 128
        $region68: #{tpu_custom_call.1} parent=59 // pred_fallthru
          _
      $region60: #{tpu_custom_call.1} parent=5 // pred_fallthru
        _
    $region6: #{tpu_custom_call.1} parent=1 // loop_footer
      %s27 = sadd.s32 1, %s23
    $region7: #{tpu_custom_call.1} parent=1 // loop_footer_branch
      %22 = sbr.rel target = $region3
    $region8: #{tpu_custom_call.1} parent=1 // loop_exit
      _
    %622 = vsyncpa [#allocation3], 1
    %s623 = scalar_lea.sflag [#allocation3], 1
    %624 = vsyncpa %s623, 1
    %625 = vsyncpa [#allocation6], 1
    %s626 = scalar_lea.sflag [#allocation6], 1
    %627 = vsyncpa %s626, 1
    %628 = vsyncpa [#allocation4], 1
    %s629 = scalar_lea.sflag [#allocation4], 1
    %630 = vsyncpa %s629, 1
    %631 = vsyncpa [#allocation10], 1
    %s632 = scalar_lea.sflag [#allocation10], 1
    %633 = vsyncpa %s632, 1

</llo_original>
